<compile_context>
chip_gen: v6e
topology: v6e:2x2x1
jax: 0.10.0
libtpu: 0.0.40
codegen_flags: <defaults>
</compile_context>

<pallas_src>
import functools

import numpy as np
import jax
import jax.numpy as jnp
from jax.experimental import pallas as pl
from jax.experimental.pallas import tpu as pltpu


def _round_up(x, m):
    return (x + m - 1) // m * m


def _block_kernel(p_ref, w_ref, g_ref, b_ref, a_ref, o_ref, *, eps, activate):
    """One batch sample: conv (single MXU matmul) + GroupNorm + optional ReLU.

    p_ref: (K, HWp)     bf16  im2col patches, lane axis = padded spatial (dense)
    w_ref: (Cout, K)    bf16  conv weight
    g_ref/b_ref: (Cout, 1) f32 GN affine (gamma / beta)
    a_ref: (Cout, Cout) f32   A[i, j] = [group(i) == group(j)] / (cpg * HW_true)
    o_ref: (Cout, HWp)  bf16
    """
    # Conv as one MXU matmul, f32 accumulation, lane axis = spatial (128-mult).
    y = jnp.dot(w_ref[...], p_ref[...], preferred_element_type=jnp.float32)

    # GroupNorm statistics: lane-reduce to per-channel sum / sum-of-squares,
    # then one tiny (Cout,Cout)@(Cout,1) matmul performs the segmented group
    # reduction and the broadcast back to channels (replaces the previous
    # O(ngroups) unrolled loop).  Padded lanes are exact zeros (W @ 0 == 0), so
    # the sums are unaffected; the true count is folded into a_ref.
    row_s = jnp.sum(y, axis=1, keepdims=True)             # (Cout, 1)
    row_ss = jnp.sum(y * y, axis=1, keepdims=True)        # (Cout, 1)
    mu = jnp.dot(a_ref[...], row_s, preferred_element_type=jnp.float32)
    ex2 = jnp.dot(a_ref[...], row_ss, preferred_element_type=jnp.float32)
    var = jnp.maximum(ex2 - mu * mu, 0.0)                 # clamp one-pass variance
    inv = jax.lax.rsqrt(var + eps)

    # Folded affine (+ optional ReLU), one FMA over the tile, written directly.
    scale = g_ref[...] * inv                               # (Cout, 1)
    shift = b_ref[...] - mu * scale                        # (Cout, 1)
    y = y * scale + shift
    if activate:
        y = jnp.maximum(y, 0.0)
    o_ref[...] = y.astype(o_ref.dtype)


def _vmem_limit_bytes():
    # Generation-adaptive scoped-VMEM limit: ~3/4 of physical capacity
    # (v5e/v6e: ~96 MiB of 128 MiB, v7x: 48 MiB of 64 MiB); conservative
    # known-good fallback if the hardware query is unavailable.
    try:
        cap = int(getattr(pltpu.get_tpu_info(), "vmem_capacity_bytes", 0))
    except Exception:
        cap = 0
    if cap <= 0:
        return 32 * 1024 * 1024
    return int(min(cap * 3 // 4, 100 * 1024 * 1024))


def basic_block_gn(x, weight, gamma, beta, *, stride=1, padding=0, dilation=1,
                   activate=False, eps=1e-5, num_groups=None,
                   out_dtype=jnp.bfloat16):
    """x: (N, Cin, H, W) NCHW; weight: (Cout, Cin, KH, KW) OIHW."""
    N, Cin, H, W = x.shape
    Cout, _, KH, KW = weight.shape
    if num_groups is None:
        num_groups = Cout // 4          # nn.GroupNorm(out_planes // 4, out_planes)
    assert num_groups > 0 and Cout % num_groups == 0, "Cout must divide into groups"
    cpg = Cout // num_groups

    # --- XLA glue: pad + im2col built directly in the transposed (N, K, HW)
    # layout with K ordered (kh, kw, ci) to match the weight reshape; bf16
    # halves the HBM bytes of the dominant patches stream.
    # TODO(synk): replace the materialized im2col (KH*KW x HBM read inflation)
    # with in-kernel shifted-window tap matmuls accumulated in VMEM scratch,
    # and add an HW-tile grid axis with streamed GN statistics for v7x VMEM.
    xp = jnp.pad(x, ((0, 0), (0, 0), (padding, padding), (padding, padding)))
    Hp, Wp = xp.shape[2], xp.shape[3]
    Ho = (Hp - (KH - 1) * dilation - 1) // stride + 1
    Wo = (Wp - (KW - 1) * dilation - 1) // stride + 1
    taps = []
    for i in range(KH):
        for j in range(KW):
            taps.append(xp[:, :,
                           i * dilation:i * dilation + (Ho - 1) * stride + 1:stride,
                           j * dilation:j * dilation + (Wo - 1) * stride + 1:stride])
    K = KH * KW * Cin
    HW = Ho * Wo
    HWp = _round_up(HW, 128)   # lane axis multiple of 128 -> unmasked stores
    patches_t = jnp.stack(taps, axis=1).reshape(N, K, HW).astype(jnp.bfloat16)
    if HWp != HW:
        patches_t = jnp.pad(patches_t, ((0, 0), (0, 0), (0, HWp - HW)))
    w_mat = jnp.transpose(weight, (0, 2, 3, 1)).reshape(Cout, K).astype(jnp.bfloat16)

    # Constant group-mean matrix: membership / true element count (cpg * HW).
    gid = np.arange(Cout) // cpg
    a_mat = jnp.asarray((gid[:, None] == gid[None, :]).astype(np.float32)
                        / float(cpg * HW))

    kern = functools.partial(_block_kernel, eps=float(eps), activate=activate)

    # TODO(synk): single-buffer the grid-invariant operands (w_mat/gamma/beta/
    # a_mat) via pipeline_mode=pl.Buffered(1) once tiles approach the v7x VMEM
    # budget; negligible at these sizes.
    out = pl.pallas_call(
        kern,
        out_shape=jax.ShapeDtypeStruct((N, Cout, HWp), out_dtype),
        grid_spec=pltpu.PrefetchScalarGridSpec(
            num_scalar_prefetch=0,
            grid=(N,),
            in_specs=[
                pl.BlockSpec((None, K, HWp), lambda b: (b, 0, 0)),  # patches^T
                pl.BlockSpec((Cout, K), lambda b: (0, 0)),          # conv weight
                pl.BlockSpec((Cout, 1), lambda b: (0, 0)),          # gamma
                pl.BlockSpec((Cout, 1), lambda b: (0, 0)),          # beta
                pl.BlockSpec((Cout, Cout), lambda b: (0, 0)),       # group matrix
            ],
            out_specs=pl.BlockSpec((None, Cout, HWp), lambda b: (b, 0, 0)),
        ),
        compiler_params=pltpu.CompilerParams(
            dimension_semantics=("parallel",),
            vmem_limit_bytes=_vmem_limit_bytes()),
    )(patches_t, w_mat,
      gamma.reshape(Cout, 1).astype(jnp.float32),
      beta.reshape(Cout, 1).astype(jnp.float32),
      a_mat)

    # Drop padded lanes; (N, Cout, HW) reshapes straight to NCHW.
    return out[:, :, :HW].reshape(N, Cout, Ho, Wo)


def _reference(x, weight, gamma, beta, *, stride, padding, dilation, activate,
               eps, num_groups=None):
    N, Cin, H, W = x.shape
    Cout = weight.shape[0]
    if num_groups is None:
        num_groups = Cout // 4
    cpg = Cout // num_groups
    conv = jax.lax.conv_general_dilated(
        x, weight, window_strides=(stride, stride),
        padding=((padding, padding), (padding, padding)),
        rhs_dilation=(dilation, dilation),
        dimension_numbers=("NCHW", "OIHW", "NCHW"))
    Ho, Wo = conv.shape[2], conv.shape[3]
    cg = conv.reshape(N, num_groups, cpg, Ho, Wo)
    mu = cg.mean(axis=(2, 3, 4), keepdims=True)
    var = cg.var(axis=(2, 3, 4), keepdims=True)
    cn = ((cg - mu) / jnp.sqrt(var + eps)).reshape(N, Cout, Ho, Wo)
    out = cn * gamma.reshape(1, Cout, 1, 1) + beta.reshape(1, Cout, 1, 1)
    if activate:
        out = jnp.maximum(out, 0.0)
    return out


if __name__ == "__main__":
    # Module config: in_planes=4, out_planes=8, kernel_size=3, stride=1,
    # padding=1, dilation=1, bias=False, activate=True.
    N, Cin, H, W = 2, 4, 16, 16
    Cout, KH, KW = 8, 3, 3
    stride, padding, dilation, activate = 1, 1, 1, True

    key = jax.random.PRNGKey(0)
    kx, kw, kg, kb = jax.random.split(key, 4)
    x = jax.random.normal(kx, (N, Cin, H, W), dtype=jnp.float32)
    weight = jax.random.normal(kw, (Cout, Cin, KH, KW), dtype=jnp.float32) * 0.1
    gamma = 1.0 + 0.1 * jax.random.normal(kg, (Cout,), dtype=jnp.float32)
    beta = 0.1 * jax.random.normal(kb, (Cout,), dtype=jnp.float32)

    out = basic_block_gn(x, weight, gamma, beta, stride=stride, padding=padding,
                         dilation=dilation, activate=activate)
    out = jax.block_until_ready(out)

    ref = _reference(x, weight, gamma, beta, stride=stride, padding=padding,
                     dilation=dilation, activate=activate, eps=1e-5)
    assert out.shape == ref.shape == (N, Cout, H, W)
    # bf16 MXU inputs and bf16 output (f32 accumulation/stats inside): compare
    # at a bf16-appropriate tolerance.
    assert jnp.allclose(out.astype(jnp.float32), ref, atol=3e-2, rtol=3e-2), \
        "mismatch vs reference"

    print("KERNEL_OK")
</pallas_src>

<mosaic_0001>
module attributes {stable_mosaic.version = 11 : i64} {
  func.func @_block_kernel(%arg0: i32, %arg1: memref<1x36x256xbf16, #tpu.memory_space<vmem>>, %arg2: memref<8x36xbf16, #tpu.memory_space<vmem>>, %arg3: memref<8x1xf32, #tpu.memory_space<vmem>>, %arg4: memref<8x1xf32, #tpu.memory_space<vmem>>, %arg5: memref<8x8xf32, #tpu.memory_space<vmem>>, %arg6: memref<1x8x256xbf16, #tpu.memory_space<vmem>>) attributes {dimension_semantics = [#tpu.dimension_semantics<parallel>], iteration_bounds = array<i64: 2>, scalar_prefetch = 0 : i64, scratch_operands = 0 : i64, tpu.core_type = #tpu.core_type<tc>, window_params = [{transform_indices = @transform_0, window_bounds = array<i64: 1, 36, 256>}, {pipeline_mode = #tpu.pipeline_mode<synchronous>, transform_indices = @transform_1, window_bounds = array<i64: 8, 36>}, {pipeline_mode = #tpu.pipeline_mode<synchronous>, transform_indices = @transform_2, window_bounds = array<i64: 8, 1>}, {pipeline_mode = #tpu.pipeline_mode<synchronous>, transform_indices = @transform_3, window_bounds = array<i64: 8, 1>}, {pipeline_mode = #tpu.pipeline_mode<synchronous>, transform_indices = @transform_4, window_bounds = array<i64: 8, 8>}, {transform_indices = @transform_5, window_bounds = array<i64: 1, 8, 256>}]} {
    %c0 = arith.constant 0 : index
    %c0_0 = arith.constant 0 : index
    %0 = vector.load %arg2[%c0, %c0_0] : memref<8x36xbf16, #tpu.memory_space<vmem>>, vector<8x36xbf16>
    %c0_1 = arith.constant 0 : index
    %c0_2 = arith.constant 0 : index
    %c0_3 = arith.constant 0 : index
    %1 = vector.load %arg1[%c0_1, %c0_2, %c0_3] : memref<1x36x256xbf16, #tpu.memory_space<vmem>>, vector<1x36x256xbf16>
    %2 = vector.shape_cast %1 : vector<1x36x256xbf16> to vector<36x256xbf16>
    %cst = arith.constant dense<0.000000e+00> : vector<8x256xf32>
    %3 = tpu.matmul %0, %2, %cst {dimension_numbers = #tpu.dot_dimension_numbers<[1], [0], [0], [1], [0, 0, 1, 1], [], []>} : vector<8x36xbf16>, vector<36x256xbf16>, vector<8x256xf32> -> vector<8x256xf32>
    %cst_4 = arith.constant dense<0.000000e+00> : vector<8xf32>
    %4 = vector.multi_reduction <add>, %3, %cst_4 [1] : vector<8x256xf32> to vector<8xf32>
    %5 = vector.shape_cast %4 : vector<8xf32> to vector<8x1xf32>
    %6 = arith.mulf %3, %3 : vector<8x256xf32>
    %cst_5 = arith.constant dense<0.000000e+00> : vector<8xf32>
    %7 = vector.multi_reduction <add>, %6, %cst_5 [1] : vector<8x256xf32> to vector<8xf32>
    %8 = vector.shape_cast %7 : vector<8xf32> to vector<8x1xf32>
    %c0_6 = arith.constant 0 : index
    %c0_7 = arith.constant 0 : index
    %9 = vector.load %arg5[%c0_6, %c0_7] : memref<8x8xf32, #tpu.memory_space<vmem>>, vector<8x8xf32>
    %cst_8 = arith.constant dense<0.000000e+00> : vector<8x1xf32>
    %10 = tpu.matmul %9, %5, %cst_8 {dimension_numbers = #tpu.dot_dimension_numbers<[1], [0], [0], [1], [0, 0, 1, 1], [], []>} : vector<8x8xf32>, vector<8x1xf32>, vector<8x1xf32> -> vector<8x1xf32>
    %c0_9 = arith.constant 0 : index
    %c0_10 = arith.constant 0 : index
    %11 = vector.load %arg5[%c0_9, %c0_10] : memref<8x8xf32, #tpu.memory_space<vmem>>, vector<8x8xf32>
    %cst_11 = arith.constant dense<0.000000e+00> : vector<8x1xf32>
    %12 = tpu.matmul %11, %8, %cst_11 {dimension_numbers = #tpu.dot_dimension_numbers<[1], [0], [0], [1], [0, 0, 1, 1], [], []>} : vector<8x8xf32>, vector<8x1xf32>, vector<8x1xf32> -> vector<8x1xf32>
    %13 = arith.mulf %10, %10 : vector<8x1xf32>
    %14 = arith.subf %12, %13 : vector<8x1xf32>
    %cst_12 = arith.constant 0.000000e+00 : f32
    %15 = vector.broadcast %cst_12 : f32 to vector<8x1xf32>
    %16 = arith.maximumf %14, %15 : vector<8x1xf32>
    %cst_13 = arith.constant 9.99999974E-6 : f32
    %17 = vector.broadcast %cst_13 : f32 to vector<8x1xf32>
    %18 = arith.addf %16, %17 : vector<8x1xf32>
    %19 = math.rsqrt %18 : vector<8x1xf32>
    %c0_14 = arith.constant 0 : index
    %c0_15 = arith.constant 0 : index
    %20 = vector.load %arg3[%c0_14, %c0_15] : memref<8x1xf32, #tpu.memory_space<vmem>>, vector<8x1xf32>
    %21 = arith.mulf %20, %19 : vector<8x1xf32>
    %c0_16 = arith.constant 0 : index
    %c0_17 = arith.constant 0 : index
    %22 = vector.load %arg4[%c0_16, %c0_17] : memref<8x1xf32, #tpu.memory_space<vmem>>, vector<8x1xf32>
    %23 = arith.mulf %10, %21 : vector<8x1xf32>
    %24 = arith.subf %22, %23 : vector<8x1xf32>
    %25 = vector.broadcast %21 : vector<8x1xf32> to vector<8x256xf32>
    %26 = arith.mulf %3, %25 : vector<8x256xf32>
    %27 = vector.broadcast %24 : vector<8x1xf32> to vector<8x256xf32>
    %28 = arith.addf %26, %27 : vector<8x256xf32>
    %cst_18 = arith.constant 0.000000e+00 : f32
    %29 = vector.broadcast %cst_18 : f32 to vector<8x256xf32>
    %30 = arith.maximumf %28, %29 : vector<8x256xf32>
    %31 = arith.truncf %30 : vector<8x256xf32> to vector<8x256xbf16>
    %c0_19 = arith.constant 0 : index
    %c0_20 = arith.constant 0 : index
    %c0_21 = arith.constant 0 : index
    %32 = vector.load %arg6[%c0_19, %c0_20, %c0_21] : memref<1x8x256xbf16, #tpu.memory_space<vmem>>, vector<1x8x256xbf16>
    %33 = vector.shape_cast %32 : vector<1x8x256xbf16> to vector<8x256xbf16>
    %34 = vector.shape_cast %31 : vector<8x256xbf16> to vector<1x8x256xbf16>
    tpu.vector_store %arg6[%c0_19, %c0_20, %c0_21], %34 {strides = array<i32>} : memref<1x8x256xbf16, #tpu.memory_space<vmem>>, vector<1x8x256xbf16>,
    return
  }
  func.func @transform_0(%arg0: i32) -> (i32, i32, i32) {
    %c0_i32 = arith.constant 0 : i32
    %c0_i32_0 = arith.constant 0 : i32
    %c0_i32_1 = arith.constant 0 : i32
    return %arg0, %c0_i32, %c0_i32_0 : i32, i32, i32
  }
  func.func @transform_1(%arg0: i32) -> (i32, i32) {
    %c0_i32 = arith.constant 0 : i32
    %c0_i32_0 = arith.constant 0 : i32
    %c0_i32_1 = arith.constant 0 : i32
    return %c0_i32, %c0_i32_0 : i32, i32
  }
  func.func @transform_2(%arg0: i32) -> (i32, i32) {
    %c0_i32 = arith.constant 0 : i32
    %c0_i32_0 = arith.constant 0 : i32
    %c0_i32_1 = arith.constant 0 : i32
    return %c0_i32, %c0_i32_0 : i32, i32
  }
  func.func @transform_3(%arg0: i32) -> (i32, i32) {
    %c0_i32 = arith.constant 0 : i32
    %c0_i32_0 = arith.constant 0 : i32
    %c0_i32_1 = arith.constant 0 : i32
    return %c0_i32, %c0_i32_0 : i32, i32
  }
  func.func @transform_4(%arg0: i32) -> (i32, i32) {
    %c0_i32 = arith.constant 0 : i32
    %c0_i32_0 = arith.constant 0 : i32
    %c0_i32_1 = arith.constant 0 : i32
    return %c0_i32, %c0_i32_0 : i32, i32
  }
  func.func @transform_5(%arg0: i32) -> (i32, i32, i32) {
    %c0_i32 = arith.constant 0 : i32
    %c0_i32_0 = arith.constant 0 : i32
    %c0_i32_1 = arith.constant 0 : i32
    return %arg0, %c0_i32, %c0_i32_0 : i32, i32, i32
  }
}

</mosaic_0001>

<llo_original>
// kernel: tpu_custom_call.1
$region0: #{tpu_custom_call.1}
  #allocation0 [shape = 'u32[]', space=smem, size = 0x4, offset = 0x4, fixed_abs, tag = 'smem constant byte address 0x4 - core index']
  #allocation1 [shape = 'u32[144,128]{1,0:T(1,128)}', space=vmem, size = 0x12000, scoped, tag = 'internal scratch']
  %s0 = inlined_call_operand.vmem [shape: bf16[2,36,256], index: 0, kind: input, shape index: {}]
  %s1 = inlined_call_operand.vmem [shape: bf16[8,36], index: 1, kind: input, shape index: {}]
  %s2 = inlined_call_operand.vmem [shape: f32[8,1], index: 2, kind: input, shape index: {}]
  %s3 = inlined_call_operand.vmem [shape: f32[8,1], index: 3, kind: input, shape index: {}]
  %s4 = inlined_call_operand.vmem [shape: f32[8,8], index: 4, kind: input, shape index: {}]
  %s5 = inlined_call_operand.hbm [shape: bf16[2,8,256], index: 5, kind: output, shape index: {}]
  %s6 = sld [smem:[#allocation0]]
  $region53: #{tpu_custom_call.1} parent=0
    _
  %s8 = ssub.s32 1, %s6
  %s9 = scalar_select 0, %s8, %s6
  $region1: #{tpu_custom_call.1} parent=0
    #allocation2 [shape = 'u8[8192]{0}', space=vmem, size = 0x2000, scoped, tag = 'output window, operand 0']
    #allocation3 [shape = 's32[2]{0}', space=sflag, size = 0x8, scoped, tag = 'scoped memory for tpu_custom_call.1']
    %10 = vsyncpa [#allocation3], 0
    %s11 = scalar_lea.sflag [#allocation3], 1
    %12 = vsyncpa %s11, 0
    loop: start=0, step=1, limit=4
    $region2: #{tpu_custom_call.1} parent=1 // loop_pre_header
      _
    $region3: #{tpu_custom_call.1} parent=1 // loop_header
      %s14 = sphi 0, %s18
      %p15 = scmp.ge.s32.totalorder %s14, 4
      %s24 = sphi 0, %s26
      %s27 = sphi 0, %s24
      %s28 = sphi 0, %s27
      %s44 = sphi 0, %s28
      %s48 = sphi 0, %s48
      %s50 = sphi 0, %s48
      %s51 = sphi 0, %s50
      %s65 = sphi 0, %s51
      %s69 = sphi 0, %s69
      %s71 = sphi 0, %s69
      %s72 = sphi 0, %s71
      %s86 = sphi 0, %s72
      %s90 = sphi 0, %s90
      %s92 = sphi 0, %s90
      %s93 = sphi 0, %s92
      %s107 = sphi 0, %s93
      %s111 = sphi 0, %s111
      %s113 = sphi 0, %s111
      %s114 = sphi 0, %s113
      %s128 = sphi 0, %s114
      %s134 = sphi 0, %s136
      %s137 = sphi 0, %s134
      %s138 = sphi 0, %s137
      %s154 = sphi 0, %s138
    $region4: #{tpu_custom_call.1} parent=1 // loop_header_branch
      %17 = sbr.rel (%p15) target = $region8
    $region5: #{tpu_custom_call.1} parent=1 // loop_body
      %s19 = ssub.s32 %s14, 1
      %s20 = ssub.s32 %s14, 2
      %s21 = sadd.s32 %s14, 1
      %s22 = ssub.s32 %s14, %s21
      %p23 = scmp.eq.s32.totalorder %s22, 0
      %s25 = sadd.s32 %s24, 1
      %s26 = scalar_select %p23, %s24, %s25
      %p29 = pneg %p23
      %p30 = scmp.eq.s32.totalorder %s14, 1
      %p31 = por %p29, %p30
      %p32 = scmp.ne.s32.totalorder %s24, %s27
      %p33 = scmp.eq.s32.totalorder %s14, 0
      %p34 = por %p32, %p33
      %p35 = scmp.ne.s32.totalorder %s24, %s27
      %p36 = scmp.eq.s32.totalorder %s19, 1
      %p37 = por %p35, %p36
      %p38 = scmp.ne.s32.totalorder %s27, %s28
      %p39 = scmp.eq.s32.totalorder %s19, 0
      %p40 = por %p38, %p39
      %p41 = scmp.ne.s32.totalorder %s27, %s28
      %p42 = scmp.eq.s32.totalorder %s20, 1
      %p43 = por %p41, %p42
      %p45 = scmp.ne.s32.totalorder %s28, %s44
      %p46 = scmp.eq.s32.totalorder %s20, 0
      %p47 = por %p45, %p46
      %s49 = sadd.s32 %s48, 1
      %p52 = scmp.eq.s32.totalorder %s14, 1
      %p53 = scmp.ne.s32.totalorder %s48, %s50
      %p54 = scmp.eq.s32.totalorder %s14, 0
      %p55 = por %p53, %p54
      %p56 = scmp.ne.s32.totalorder %s48, %s50
      %p57 = scmp.eq.s32.totalorder %s19, 1
      %p58 = por %p56, %p57
      %p59 = scmp.ne.s32.totalorder %s50, %s51
      %p60 = scmp.eq.s32.totalorder %s19, 0
      %p61 = por %p59, %p60
      %p62 = scmp.ne.s32.totalorder %s50, %s51
      %p63 = scmp.eq.s32.totalorder %s20, 1
      %p64 = por %p62, %p63
      %p66 = scmp.ne.s32.totalorder %s51, %s65
      %p67 = scmp.eq.s32.totalorder %s20, 0
      %p68 = por %p66, %p67
      %s70 = sadd.s32 %s69, 1
      %p73 = scmp.eq.s32.totalorder %s14, 1
      %p74 = scmp.ne.s32.totalorder %s69, %s71
      %p75 = scmp.eq.s32.totalorder %s14, 0
      %p76 = por %p74, %p75
      %p77 = scmp.ne.s32.totalorder %s69, %s71
      %p78 = scmp.eq.s32.totalorder %s19, 1
      %p79 = por %p77, %p78
      %p80 = scmp.ne.s32.totalorder %s71, %s72
      %p81 = scmp.eq.s32.totalorder %s19, 0
      %p82 = por %p80, %p81
      %p83 = scmp.ne.s32.totalorder %s71, %s72
      %p84 = scmp.eq.s32.totalorder %s20, 1
      %p85 = por %p83, %p84
      %p87 = scmp.ne.s32.totalorder %s72, %s86
      %p88 = scmp.eq.s32.totalorder %s20, 0
      %p89 = por %p87, %p88
      %s91 = sadd.s32 %s90, 1
      %p94 = scmp.eq.s32.totalorder %s14, 1
      %p95 = scmp.ne.s32.totalorder %s90, %s92
      %p96 = scmp.eq.s32.totalorder %s14, 0
      %p97 = por %p95, %p96
      %p98 = scmp.ne.s32.totalorder %s90, %s92
      %p99 = scmp.eq.s32.totalorder %s19, 1
      %p100 = por %p98, %p99
      %p101 = scmp.ne.s32.totalorder %s92, %s93
      %p102 = scmp.eq.s32.totalorder %s19, 0
      %p103 = por %p101, %p102
      %p104 = scmp.ne.s32.totalorder %s92, %s93
      %p105 = scmp.eq.s32.totalorder %s20, 1
      %p106 = por %p104, %p105
      %p108 = scmp.ne.s32.totalorder %s93, %s107
      %p109 = scmp.eq.s32.totalorder %s20, 0
      %p110 = por %p108, %p109
      %s112 = sadd.s32 %s111, 1
      %p115 = scmp.eq.s32.totalorder %s14, 1
      %p116 = scmp.ne.s32.totalorder %s111, %s113
      %p117 = scmp.eq.s32.totalorder %s14, 0
      %p118 = por %p116, %p117
      %p119 = scmp.ne.s32.totalorder %s111, %s113
      %p120 = scmp.eq.s32.totalorder %s19, 1
      %p121 = por %p119, %p120
      %p122 = scmp.ne.s32.totalorder %s113, %s114
      %p123 = scmp.eq.s32.totalorder %s19, 0
      %p124 = por %p122, %p123
      %p125 = scmp.ne.s32.totalorder %s113, %s114
      %p126 = scmp.eq.s32.totalorder %s20, 1
      %p127 = por %p125, %p126
      %p129 = scmp.ne.s32.totalorder %s114, %s128
      %p130 = scmp.eq.s32.totalorder %s20, 0
      %p131 = por %p129, %p130
      %s132 = ssub.s32 %s14, %s21
      %p133 = scmp.eq.s32.totalorder %s132, 0
      %s135 = sadd.s32 %s134, 1
      %s136 = scalar_select %p133, %s134, %s135
      %p139 = pneg %p133
      %p140 = scmp.eq.s32.totalorder %s14, 1
      %p141 = por %p139, %p140
      %p142 = scmp.ne.s32.totalorder %s134, %s137
      %p143 = scmp.eq.s32.totalorder %s14, 0
      %p144 = por %p142, %p143
      %p145 = scmp.ne.s32.totalorder %s134, %s137
      %p146 = scmp.eq.s32.totalorder %s19, 1
      %p147 = por %p145, %p146
      %p148 = scmp.ne.s32.totalorder %s137, %s138
      %p149 = scmp.eq.s32.totalorder %s19, 0
      %p150 = por %p148, %p149
      %p151 = scmp.ne.s32.totalorder %s137, %s138
      %p152 = scmp.eq.s32.totalorder %s20, 1
      %p153 = por %p151, %p152
      %p155 = scmp.ne.s32.totalorder %s138, %s154
      %p156 = scmp.eq.s32.totalorder %s20, 0
      %p157 = por %p155, %p156
      %p158 = scmp.le.s32.totalorder 1, %s14
      %p159 = scmp.lt.s32.totalorder %s14, 3
      %p160 = pnand %p158, %p159
      %p161 = pneg %p160
      // Predicated region
      $region9: #{tpu_custom_call.1} parent=5 // pred_check
        _
      $region10: #{tpu_custom_call.1} parent=5 // pred_check_branch
        %163 = sbr.rel (%p160) target = $region12
      $region11: #{tpu_custom_call.1} parent=5 // pred_region
        %s164 = ssub.s32 %s14, 1
        // Predicated region
        $region13: #{tpu_custom_call.1} parent=11 // pred_check
          %p165 = pneg %p61
        $region14: #{tpu_custom_call.1} parent=11 // pred_check_branch
          %167 = sbr.rel (%p165) target = $region16
        $region15: #{tpu_custom_call.1} parent=11 // pred_region
          _
        $region16: #{tpu_custom_call.1} parent=11 // pred_fallthru
          _
        // Predicated region
        $region17: #{tpu_custom_call.1} parent=11 // pred_check
          %p168 = pneg %p82
        $region18: #{tpu_custom_call.1} parent=11 // pred_check_branch
          %170 = sbr.rel (%p168) target = $region20
        $region19: #{tpu_custom_call.1} parent=11 // pred_region
          _
        $region20: #{tpu_custom_call.1} parent=11 // pred_fallthru
          _
        // Predicated region
        $region21: #{tpu_custom_call.1} parent=11 // pred_check
          %p171 = pneg %p103
        $region22: #{tpu_custom_call.1} parent=11 // pred_check_branch
          %173 = sbr.rel (%p171) target = $region24
        $region23: #{tpu_custom_call.1} parent=11 // pred_region
          _
        $region24: #{tpu_custom_call.1} parent=11 // pred_fallthru
          _
        // Predicated region
        $region25: #{tpu_custom_call.1} parent=11 // pred_check
          %p174 = pneg %p124
        $region26: #{tpu_custom_call.1} parent=11 // pred_check_branch
          %176 = sbr.rel (%p174) target = $region28
        $region27: #{tpu_custom_call.1} parent=11 // pred_region
          _
        $region28: #{tpu_custom_call.1} parent=11 // pred_fallthru
          _
      $region12: #{tpu_custom_call.1} parent=5 // pred_fallthru
        _
      %p177 = scmp.lt.s32.totalorder %s14, 2
      // Predicated region
      $region29: #{tpu_custom_call.1} parent=5 // pred_check
        %p178 = pneg %p177
      $region30: #{tpu_custom_call.1} parent=5 // pred_check_branch
        %180 = sbr.rel (%p178) target = $region32
      $region31: #{tpu_custom_call.1} parent=5 // pred_region
        // Predicated region
        $region33: #{tpu_custom_call.1} parent=31 // pred_check
          %p181 = pneg %p34
        $region34: #{tpu_custom_call.1} parent=31 // pred_check_branch
          %183 = sbr.rel (%p181) target = $region36
        $region35: #{tpu_custom_call.1} parent=31 // pred_region
          %p184 = scmp.lt.s32.totalorder %s14, 1
          %s185 = scalar_select %p184, %s14, 1
          %s186 = smul.addr %s185, 10
          %s187 = smul.addr %s186, 4
          %s188 = scalar_lea.vmem %s0, %s187
        $region36: #{tpu_custom_call.1} parent=31 // pred_fallthru
          _
      $region32: #{tpu_custom_call.1} parent=5 // pred_fallthru
        _
      %p189 = scmp.le.s32.totalorder 1, %s14
      %p190 = scmp.lt.s32.totalorder %s14, 3
      %p191 = pnand %p189, %p190
      %p192 = pneg %p191
      // Predicated region
      $region37: #{tpu_custom_call.1} parent=5 // pred_check
        _
      $region38: #{tpu_custom_call.1} parent=5 // pred_check_branch
        %194 = sbr.rel (%p191) target = $region40
      $region39: #{tpu_custom_call.1} parent=5 // pred_region
        %s195 = ssub.s32 %s14, 1
        %p196 = scmp.lt.s32.totalorder %s19, 1
        %s197 = scalar_select %p196, %s19, 1
        %s198 = smul.addr %s197, 10
        %s199 = smul.addr %s198, 4
        %s200 = scalar_lea.vmem %s0, %s199
        %p201 = pneg %p40
        %p202 = pneg %p37
        %p203 = pneg %p61
        %p204 = pneg %p58
        %p205 = pneg %p82
        %p206 = pneg %p79
        %p207 = pneg %p103
        %p208 = pneg %p100
        %p209 = pneg %p124
        %p210 = pneg %p121
        %p211 = pneg %p150
        %p212 = pneg %p147
        %s213 = sand.u32 %s137, 1
        %s214 = scalar_lea.sflag [#allocation3], %s213
        %s215 = sand.u32 %s137, 1
        %s216 = smul.addr %s215, 8
        %s217 = scalar_lea.vmem [#allocation2], %s216
        %p218 = scmp.lt.s32.totalorder %s19, 1
        %s219 = scalar_select %p218, %s19, 1
        %s220 = smul.addr %s219, 10
        %s221 = smul.addr %s220, 4
        %s222 = scalar_lea.vmem %s0, %s221
        %v224 = vld [vmem:[%s1] sm:$0xf]
        %v225 = vld [vmem:[%s222] sm:$0xff]
        %v226 = vld [vmem:[%s222 + $0x8] sm:$0xff]
        %v227 = vld [vmem:[%s222 + $0x10] sm:$0xff]
        %v228 = vld [vmem:[%s222 + $0x18] sm:$0xff]
        %v229 = vld [vmem:[%s222 + $0x20] sm:$0x33]
        %v235 = vunpack.c.l.b16 %v225
        %v236 = vunpack.c.h.b16 %v225
        %v237 = vunpack.c.l.b16 %v226
        %v238 = vunpack.c.h.b16 %v226
        %v239 = vunpack.c.l.b16 %v227
        %v240 = vunpack.c.h.b16 %v227
        %v241 = vunpack.c.l.b16 %v228
        %v242 = vunpack.c.h.b16 %v228
        %v243 = vunpack.c.l.b16 %v229
        %v244 = vunpack.c.h.b16 %v229
        %v245 = vpack.c.b16 %v237, %v235
        %v246 = vpack.c.b16 %v238, %v236
        %v247 = vpack.c.b16 %v241, %v239
        %v248 = vpack.c.b16 %v242, %v240
        %v249 = vpack.c.b16 %v243, %v243
        %v250 = vpack.c.b16 %v244, %v244
        %vm255 = vcmask 293888
        %v257 = vsel %vm255, %v224, 0
        %vm259 = vcmask 1041408
        %v261 = vsel %vm259, %v249, 0
        %v264 = vsel %vm259, %v250, 0
        %266 = vmatprep.subr.bf16.mxu0 0
        %267 = vmatpush1.bf16.msra.mxu0 0
        %268 = vmatprep.subr.bf16.mxu0 0
        %269 = vmatpush1.bf16.msra.mxu0 0
        %270 = vmatprep.subr.bf16.mxu0 0
        %271 = vmatpush1.bf16.msra.mxu0 0
        %272 = vmatprep.subr.bf16.mxu0 0
        %273 = vmatpush1.bf16.msra.mxu0 0
        %274 = vmatprep.subr.bf16.mxu0 0
        %275 = vmatpush1.bf16.msra.mxu0 0
        %276 = vmatprep.subr.bf16.mxu0 %v264
        %277 = vmatpush1.bf16.msra.mxu0 %v261
        %278 = vmatprep.subr.bf16.mxu0 %v248
        %279 = vmatpush1.bf16.msra.mxu0 %v247
        %280 = vmatprep.subr.bf16.mxu0 %v246
        %281 = vmatpush1.bf16.msra.mxu0 %v245
        %282 = vmatprep.subr.bf16.mxu0 0
        %283 = vmatpush2.bf16.msra.mxu0 0
        %284 = vmatprep.subr.bf16.mxu0 0
        %285 = vmatpush2.bf16.msra.mxu0 0
        %286 = vmatprep.subr.bf16.mxu0 0
        %287 = vmatpush2.bf16.msra.mxu0 0
        %288 = vmatprep.subr.bf16.mxu0 0
        %289 = vmatpush2.bf16.msra.mxu0 0
        %290 = vmatprep.subr.bf16.mxu0 0
        %291 = vmatpush2.bf16.msra.mxu0 0
        %292 = vmatprep.subr.bf16.mxu0 0
        %293 = vmatpush2.bf16.msra.mxu0 0
        %294 = vmatprep.subr.bf16.mxu0 0
        %295 = vmatpush2.bf16.msra.mxu0 0
        %296 = vmatprep.subr.bf16.mxu0 0
        %297 = vmatpush2.bf16.msra.mxu0 0
        %298 = vmatprep.mubr.bf16.mxu0 0
        %299 = vmatmul.mubr.bf16.gmra.mxu0 %v257
        %v300 = vpop.f32.mrf.mxu0
        %v301 = vadd.f32 0.0, %v300
        %v302 = vpop.f32.mrf.mxu0
        %v303 = vadd.f32 0.0, %v302
        %v304 = vpop.f32.mrf.mxu0
        %v305 = vpop.f32.mrf.mxu0
        %306 = vdwg.mxu0
        %v307 = vadd.f32 %v301, %v303
        %308 = vadd.xlane.f32.xlu0 %v307
        %v309 = vpop.xlane.xlu0 %308
        %v310 = vmul.f32 %v301, %v301
        %v311 = vmul.f32 %v303, %v303
        %v312 = vadd.f32 %v310, %v311
        %313 = vadd.xlane.f32.xlu0 %v312
        %v314 = vpop.xlane.xlu0 %313
        %v315 = vld [vmem:[%s4] sm:$0xff]
        %vm316 = vcmask 64512
        %v318 = vsel %vm316, %v315, 0
        %320 = vmatprep.subr.mxu0 0.0
        %321 = vmatpush1.msra.mxu0 0.0
        %322 = vmatprep.subr.mxu0 0.0
        %323 = vmatpush1.msra.mxu0 0.0
        %324 = vmatprep.subr.mxu0 0.0
        %325 = vmatpush1.msra.mxu0 0.0
        %326 = vmatprep.subr.mxu0 0.0
        %327 = vmatpush1.msra.mxu0 0.0
        %328 = vmatprep.subr.mxu0 0.0
        %329 = vmatpush1.msra.mxu0 0.0
        %330 = vmatprep.subr.mxu0 0.0
        %331 = vmatpush1.msra.mxu0 0.0
        %332 = vmatprep.subr.mxu0 0.0
        %333 = vmatpush1.msra.mxu0 0.0
        %334 = vmatprep.subr.mxu0 0.0
        %335 = vmatpush1.msra.mxu0 0.0
        %336 = vmatprep.subr.mxu0 0.0
        %337 = vmatpush1.msra.mxu0 0.0
        %338 = vmatprep.subr.mxu0 0.0
        %339 = vmatpush1.msra.mxu0 0.0
        %340 = vmatprep.subr.mxu0 0.0
        %341 = vmatpush1.msra.mxu0 0.0
        %342 = vmatprep.subr.mxu0 0.0
        %343 = vmatpush1.msra.mxu0 0.0
        %344 = vmatprep.subr.mxu0 0.0
        %345 = vmatpush1.msra.mxu0 0.0
        %346 = vmatprep.subr.mxu0 0.0
        %347 = vmatpush1.msra.mxu0 0.0
        %348 = vmatprep.subr.mxu0 0.0
        %349 = vmatpush1.msra.mxu0 0.0
        %350 = vmatprep.subr.mxu0 0.0
        %351 = vmatpush1.msra.mxu0 %v309
        %352 = vmatprep.subr.mxu0 0.0
        %353 = vmatpush2.msra.mxu0 0.0
        %354 = vmatprep.subr.mxu0 0.0
        %355 = vmatpush2.msra.mxu0 0.0
        %356 = vmatprep.subr.mxu0 0.0
        %357 = vmatpush2.msra.mxu0 0.0
        %358 = vmatprep.subr.mxu0 0.0
        %359 = vmatpush2.msra.mxu0 0.0
        %360 = vmatprep.subr.mxu0 0.0
        %361 = vmatpush2.msra.mxu0 0.0
        %362 = vmatprep.subr.mxu0 0.0
        %363 = vmatpush2.msra.mxu0 0.0
        %364 = vmatprep.subr.mxu0 0.0
        %365 = vmatpush2.msra.mxu0 0.0
        %366 = vmatprep.subr.mxu0 0.0
        %367 = vmatpush2.msra.mxu0 0.0
        %368 = vmatprep.subr.mxu0 0.0
        %369 = vmatpush2.msra.mxu0 0.0
        %370 = vmatprep.subr.mxu0 0.0
        %371 = vmatpush2.msra.mxu0 0.0
        %372 = vmatprep.subr.mxu0 0.0
        %373 = vmatpush2.msra.mxu0 0.0
        %374 = vmatprep.subr.mxu0 0.0
        %375 = vmatpush2.msra.mxu0 0.0
        %376 = vmatprep.subr.mxu0 0.0
        %377 = vmatpush2.msra.mxu0 0.0
        %378 = vmatprep.subr.mxu0 0.0
        %379 = vmatpush2.msra.mxu0 0.0
        %380 = vmatprep.subr.mxu0 0.0
        %381 = vmatpush2.msra.mxu0 0.0
        %382 = vmatprep.subr.mxu0 0.0
        %383 = vmatpush2.msra.mxu0 0.0
        %384 = vmatprep.mubr.f32.mxu0 0.0
        %385 = vmatmul.mubr.f32.gmra.mxu0 %v318
        %v386 = vpop.f32.mrf.mxu0
        %v387 = vadd.f32 0.0, %v386
        %v388 = vpop.f32.mrf.mxu0
        %389 = vdwg.mxu0
        %390 = vmatprep.subr.mxu0 0.0
        %391 = vmatpush1.msra.mxu0 0.0
        %392 = vmatprep.subr.mxu0 0.0
        %393 = vmatpush1.msra.mxu0 0.0
        %394 = vmatprep.subr.mxu0 0.0
        %395 = vmatpush1.msra.mxu0 0.0
        %396 = vmatprep.subr.mxu0 0.0
        %397 = vmatpush1.msra.mxu0 0.0
        %398 = vmatprep.subr.mxu0 0.0
        %399 = vmatpush1.msra.mxu0 0.0
        %400 = vmatprep.subr.mxu0 0.0
        %401 = vmatpush1.msra.mxu0 0.0
        %402 = vmatprep.subr.mxu0 0.0
        %403 = vmatpush1.msra.mxu0 0.0
        %404 = vmatprep.subr.mxu0 0.0
        %405 = vmatpush1.msra.mxu0 0.0
        %406 = vmatprep.subr.mxu0 0.0
        %407 = vmatpush1.msra.mxu0 0.0
        %408 = vmatprep.subr.mxu0 0.0
        %409 = vmatpush1.msra.mxu0 0.0
        %410 = vmatprep.subr.mxu0 0.0
        %411 = vmatpush1.msra.mxu0 0.0
        %412 = vmatprep.subr.mxu0 0.0
        %413 = vmatpush1.msra.mxu0 0.0
        %414 = vmatprep.subr.mxu0 0.0
        %415 = vmatpush1.msra.mxu0 0.0
        %416 = vmatprep.subr.mxu0 0.0
        %417 = vmatpush1.msra.mxu0 0.0
        %418 = vmatprep.subr.mxu0 0.0
        %419 = vmatpush1.msra.mxu0 0.0
        %420 = vmatprep.subr.mxu0 0.0
        %421 = vmatpush1.msra.mxu0 %v314
        %422 = vmatprep.subr.mxu0 0.0
        %423 = vmatpush2.msra.mxu0 0.0
        %424 = vmatprep.subr.mxu0 0.0
        %425 = vmatpush2.msra.mxu0 0.0
        %426 = vmatprep.subr.mxu0 0.0
        %427 = vmatpush2.msra.mxu0 0.0
        %428 = vmatprep.subr.mxu0 0.0
        %429 = vmatpush2.msra.mxu0 0.0
        %430 = vmatprep.subr.mxu0 0.0
        %431 = vmatpush2.msra.mxu0 0.0
        %432 = vmatprep.subr.mxu0 0.0
        %433 = vmatpush2.msra.mxu0 0.0
        %434 = vmatprep.subr.mxu0 0.0
        %435 = vmatpush2.msra.mxu0 0.0
        %436 = vmatprep.subr.mxu0 0.0
        %437 = vmatpush2.msra.mxu0 0.0
        %438 = vmatprep.subr.mxu0 0.0
        %439 = vmatpush2.msra.mxu0 0.0
        %440 = vmatprep.subr.mxu0 0.0
        %441 = vmatpush2.msra.mxu0 0.0
        %442 = vmatprep.subr.mxu0 0.0
        %443 = vmatpush2.msra.mxu0 0.0
        %444 = vmatprep.subr.mxu0 0.0
        %445 = vmatpush2.msra.mxu0 0.0
        %446 = vmatprep.subr.mxu0 0.0
        %447 = vmatpush2.msra.mxu0 0.0
        %448 = vmatprep.subr.mxu0 0.0
        %449 = vmatpush2.msra.mxu0 0.0
        %450 = vmatprep.subr.mxu0 0.0
        %451 = vmatpush2.msra.mxu0 0.0
        %452 = vmatprep.subr.mxu0 0.0
        %453 = vmatpush2.msra.mxu0 0.0
        %454 = vmatprep.mubr.f32.mxu0 0.0
        %455 = vmatmul.mubr.f32.gmra.mxu0 %v318
        %v456 = vpop.f32.mrf.mxu0
        %v457 = vadd.f32 0.0, %v456
        %v458 = vpop.f32.mrf.mxu0
        %459 = vdwg.mxu0
        %v460 = vmul.f32 %v387, %v387
        %v461 = vsub.f32 %v457, %v460
        %v462 = vmax.f32 %v461, 0.0
        %v463 = vadd.f32 %v462, 1e-05
        %v464 = vrsqrt.pop %v463
        %v465 = vld [vmem:[%s2] sm:$0xff]
        %v466 = vmul.f32 %v465, %v464
        %v467 = vld [vmem:[%s3] sm:$0xff]
        %v468 = vmul.f32 %v387, %v466
        %v469 = vsub.f32 %v467, %v468
        %471 = vset.pattern.permute.xlu0 0
        %472 = vperm.xlu0 %471, %v466
        %v473 = vpop.permute.xlu0 %472
        %v475 = vmul.f32 %v301, %v473
        %v476 = vmul.f32 %v303, %v473
        %478 = vset.pattern.permute.xlu0 0
        %479 = vperm.xlu0 %478, %v469
        %v480 = vpop.permute.xlu0 %479
        %v482 = vadd.f32 %v475, %v480
        %v483 = vadd.f32 %v476, %v480
        %v484 = vmax.f32 %v482, 0.0
        %v485 = vmax.f32 %v483, 0.0
        %v486 = vpack.c.bf16 %v484, %v484
        %v487 = vpack.c.bf16 %v485, %v485
        %v490 = vunpack.c.l.b16 %v486
        %v491 = vunpack.c.l.b16 %v487
        %v492 = vpack.c.b16 %v491, %v490
        %494 = vst [vmem:[%s217] sm:$0xff] %v492
        %s495 = sand.u32 %s137, 1
        %s496 = scalar_lea.sflag [#allocation3], %s495
        %s497 = sand.u32 %s137, 1
        %s498 = smul.addr %s497, 8
        %s499 = scalar_lea.vmem [#allocation2], %s498
        // Predicated region
        $region41: #{tpu_custom_call.1} parent=39 // pred_check
          %p500 = pneg %p147
        $region42: #{tpu_custom_call.1} parent=39 // pred_check_branch
          %502 = sbr.rel (%p500) target = $region44
        $region43: #{tpu_custom_call.1} parent=39 // pred_region
          %s504 = ssub.s32 128, 128
          %505 = vsyncadd %s496, %s504
          %s506 = smul.addr %s19, 2
          %s507 = smul.addr %s506, 64
          %s508 = scalar_lea.hbm %s5, %s507
          %s510 = sshll.u32 %s499, 4
          %s511 = int_to_ptr.vmem [resolvable:$true] %s510
          %513 = dma.vmem_to_hbm [thread:$0]  %s511, 128, %s508, %s496
        $region44: #{tpu_custom_call.1} parent=39 // pred_fallthru
          _
      $region40: #{tpu_custom_call.1} parent=5 // pred_fallthru
        _
      %p514 = scmp.le.s32.totalorder 2, %s14
      // Predicated region
      $region45: #{tpu_custom_call.1} parent=5 // pred_check
        %p515 = pneg %p514
      $region46: #{tpu_custom_call.1} parent=5 // pred_check_branch
        %517 = sbr.rel (%p515) target = $region48
      $region47: #{tpu_custom_call.1} parent=5 // pred_region
        %s518 = ssub.s32 %s14, 2
        // Predicated region
        $region49: #{tpu_custom_call.1} parent=47 // pred_check
          %p519 = pneg %p153
        $region50: #{tpu_custom_call.1} parent=47 // pred_check_branch
          %521 = sbr.rel (%p519) target = $region52
        $region51: #{tpu_custom_call.1} parent=47 // pred_region
          %s522 = sand.u32 %s138, 1
          %s523 = scalar_lea.sflag [#allocation3], %s522
          %s524 = sand.u32 %s138, 1
          %s525 = smul.addr %s524, 8
          %s526 = scalar_lea.vmem [#allocation2], %s525
          %527 = dma.done %s523, 128
        $region52: #{tpu_custom_call.1} parent=47 // pred_fallthru
          _
      $region48: #{tpu_custom_call.1} parent=5 // pred_fallthru
        _
    $region6: #{tpu_custom_call.1} parent=1 // loop_footer
      %s18 = sadd.s32 1, %s14
    $region7: #{tpu_custom_call.1} parent=1 // loop_footer_branch
      %13 = sbr.rel target = $region3
    $region8: #{tpu_custom_call.1} parent=1 // loop_exit
      _
    %528 = vsyncpa [#allocation3], 1
    %s529 = scalar_lea.sflag [#allocation3], 1
    %530 = vsyncpa %s529, 1

</llo_original>
